<compile_context>
chip_gen: v5e
topology: v5e:2x2
jax: 0.10.0
libtpu: 0.0.40
codegen_flags: <defaults>
</compile_context>

<pallas_src>
import math

import jax
import jax.numpy as jnp
from jax.experimental import pallas as pl
from jax.experimental.pallas import tpu as pltpu


def _round_up(n, m):
    return ((n + m - 1) // m) * m


# ---------------------------------------------------------------------------
# Fused GRU-gate kernel: one row-tile of x / y per grid step.
# ---------------------------------------------------------------------------
def _gru_gate_kernel(x_ref, y_ref, wy_ref, wx_ref, bz_ref, whrx_ref, o_ref):
    E = o_ref.shape[-1]

    # bf16 activations feed the MXU; accumulation is f32 (preferred_element_type).
    y_lo = y_ref[...].astype(jnp.bfloat16)
    x_lo = x_ref[...].astype(jnp.bfloat16)

    # Two wide matmuls produce all independent pre-activations in one shot:
    #   pre_y = y @ [W_r | W_z | W_g]  -> (tm, 3E)
    #   pre_x = x @ [U_r | U_z]        -> (tm, 2E)
    # (column slices below are free when E % 128 == 0; merely cheap otherwise)
    pre_y = jnp.dot(y_lo, wy_ref[...], preferred_element_type=jnp.float32)
    pre_x = jnp.dot(x_lo, wx_ref[...], preferred_element_type=jnp.float32)

    def sigmoid(a):
        # 1 EUP tanh + 2 VPU ops (vs 2 EUP ops for exp+recip): keeps the single
        # EUP slot from becoming the binding slot.
        return 0.5 * (jnp.tanh(0.5 * a) + 1.0)

    x_f32 = x_ref[...].astype(jnp.float32)
    r = sigmoid(pre_y[:, :E] + pre_x[:, :E])
    # Dependent tail: (r*x) @ U_g — issue as early as possible after r.
    rx_lo = (r * x_f32).astype(jnp.bfloat16)
    h_pre = pre_y[:, 2 * E:] + jnp.dot(
        rx_lo, whrx_ref[...], preferred_element_type=jnp.float32)

    z = sigmoid(pre_y[:, E:2 * E] + pre_x[:, E:2 * E]
                + bz_ref[...].astype(jnp.float32))
    h_hat = jnp.tanh(h_pre)

    # out = x + z*(h_hat - x): one fewer VPU multiply than (1-z)*x + z*h_hat.
    # Re-read x so the f32 copy does not stay live across the matmuls.
    x_e = x_ref[...].astype(jnp.float32)
    o_ref[...] = (x_e + z * (h_hat - x_e)).astype(o_ref.dtype)


def _default_vmem_limit(tm, E, act_itemsize, single_buffer_weights):
    """Explicit VMEM budget: fused bf16 weights + bias + pipelined act tiles."""
    wbuf = 1 if single_buffer_weights else 2
    weight_bytes = wbuf * (6 * E * E * 2)                 # (E,3E)+(E,2E)+(E,E) bf16
    bias_bytes = wbuf * 8 * max(E, 128) * 4               # (1,E) f32 padded tile
    act_bytes = 2 * 2 * tm * max(E, 128) * act_itemsize   # x & y, double-buffered
    out_bytes = 2 * tm * max(E, 128) * act_itemsize       # output, double-buffered
    headroom = 8 << 20                                     # spills / internal scratch
    need = weight_bytes + bias_bytes + act_bytes + out_bytes + headroom
    return int(min(_round_up(need, 1 << 20), 100 << 20))


def gru_gate_forward(x, y, params, *, block_rows=256, vmem_limit_bytes=None,
                     single_buffer_weights=True):
    """x, y: (..., E). params: fused bf16 weights wy/(E,3E), wx/(E,2E), whrx/(E,E),
    bias bz/(1,E) f32.  Weights are in (in, out) layout: out = in @ W."""
    assert x.shape == y.shape, (x.shape, y.shape)
    E = x.shape[-1]
    lead = x.shape[:-1]
    M = math.prod(lead) if lead else 1

    x2 = x.reshape(M, E)
    y2 = y.reshape(M, E)

    # Row-tile size: multiple of 8 sublanes, capped at block_rows.  If a single
    # tile would cover all rows, split into >=2 grid steps so the "parallel"
    # axis shards across both TensorCores on v7x (no effect on v5e/v6e).
    block_rows = max(8, _round_up(block_rows, 8))
    tm = min(block_rows, _round_up(M, 8))
    if M > 8 and pl.cdiv(M, tm) < 2:
        tm = _round_up(pl.cdiv(M, 2), 8)
    grid = (pl.cdiv(M, tm),)

    if vmem_limit_bytes is None:
        vmem_limit_bytes = _default_vmem_limit(
            tm, E, x.dtype.itemsize, single_buffer_weights)

    def build(sbw):
        res_kwargs = {"pipeline_mode": pl.Buffered(1)} if sbw else {}
        act_spec = pl.BlockSpec((tm, E), lambda i: (i, 0))   # streamed row tiles
        in_specs = [
            act_spec,                                               # x
            act_spec,                                               # y
            pl.BlockSpec((E, 3 * E), lambda i: (0, 0), **res_kwargs),  # wy
            pl.BlockSpec((E, 2 * E), lambda i: (0, 0), **res_kwargs),  # wx
            pl.BlockSpec((1, E), lambda i: (0, 0), **res_kwargs),      # bz
            pl.BlockSpec((E, E), lambda i: (0, 0), **res_kwargs),      # whrx
        ]
        return pl.pallas_call(
            _gru_gate_kernel,
            out_shape=jax.ShapeDtypeStruct((M, E), x.dtype),
            grid=grid,
            in_specs=in_specs,
            out_specs=act_spec,
            compiler_params=pltpu.CompilerParams(
                dimension_semantics=("parallel",),
                vmem_limit_bytes=vmem_limit_bytes,
            ),
        )

    args = (x2, y2, params["wy"], params["wx"], params["bz"], params["whrx"])
    if single_buffer_weights:
        try:
            out = jax.block_until_ready(build(True)(*args))
        except Exception:
            # Fallback for JAX builds that reject Buffered(1) on pallas_call
            # BlockSpecs: identical kernel, default double-buffered residents.
            out = jax.block_until_ready(build(False)(*args))
    else:
        out = jax.block_until_ready(build(False)(*args))

    return out.reshape(*lead, E)


# ---------------------------------------------------------------------------
# Module wrapper (parameter setup mirrors the PyTorch GRUGate)
# ---------------------------------------------------------------------------
class GRUGate:
    """GRU-style gate (Parisotto et al., "Stabilizing Transformers for RL")."""

    def __init__(self, embed_dim, key=None, block_rows=256):
        self.embed_dim = embed_dim
        self.block_rows = block_rows
        if key is None:
            key = jax.random.PRNGKey(0)
        ks = jax.random.split(key, 6)
        bound = 1.0 / math.sqrt(embed_dim)

        def w(k):
            return jax.random.uniform(k, (embed_dim, embed_dim),
                                      jnp.float32, -bound, bound)

        # Weights stored in (in, out) layout: out = in @ W.
        # NOTE: this is the TRANSPOSE of torch.nn.Linear.weight — transpose when
        # importing real PyTorch checkpoints.
        wry, wrx, wzy, wzx, why, whrx = (w(k) for k in ks)
        # Only z_x has a bias in the PyTorch module (filled with -2.0).
        bz = jnp.full((1, embed_dim), -2.0, jnp.float32)

        self.params_f32 = dict(wry=wry, wrx=wrx, wzy=wzy, wzx=wzx,
                               why=why, whrx=whrx, bz=bz)

        # Fused bf16 kernel params (cast once at init; stay VMEM-resident):
        #   wy   = [W_r | W_z | W_g]  (E, 3E)   applied to y
        #   wx   = [U_r | U_z]        (E, 2E)   applied to x
        #   whrx = U_g                (E, E)    applied to r*x (dependent)
        self.params_kernel = dict(
            wy=jnp.concatenate([wry, wzy, why], axis=1).astype(jnp.bfloat16),
            wx=jnp.concatenate([wrx, wzx], axis=1).astype(jnp.bfloat16),
            whrx=whrx.astype(jnp.bfloat16),
            bz=bz,
        )

    def __call__(self, x, y):
        return gru_gate_forward(x, y, self.params_kernel,
                                block_rows=self.block_rows)

    def reference(self, x, y):
        """Plain-JAX f32 reference of the PyTorch forward (for validation)."""
        p = self.params_f32
        r = jax.nn.sigmoid(y @ p["wry"] + x @ p["wrx"])
        z = jax.nn.sigmoid(y @ p["wzy"] + x @ p["wzx"] + p["bz"])
        h_hat = jnp.tanh(y @ p["why"] + (r * x) @ p["whrx"])
        return (1.0 - z) * x + z * h_hat


if __name__ == "__main__":
    key = jax.random.PRNGKey(0)
    k_x, k_y, k_p = jax.random.split(key, 3)

    T, N, E = 8, 2, 32  # seq len, batch, embed dim
    x = jax.random.normal(k_x, (T, N, E), jnp.float32)
    y = jax.random.normal(k_y, (T, N, E), jnp.float32)

    gate = GRUGate(E, key=k_p)

    out = gate(x, y)
    out = jax.block_until_ready(out)

    assert out.shape == (T, N, E)
    assert bool(jnp.isfinite(out).all())

    ref = gate.reference(x, y)
    max_err = float(jnp.max(jnp.abs(out - ref)))
    # bf16 matmuls with f32 accumulation vs pure-f32 reference.
    assert max_err < 5e-2, f"max abs err {max_err}"

    print("KERNEL_OK")
</pallas_src>

<mosaic_0001>
module attributes {stable_mosaic.version = 11 : i64} {
  func.func @_gru_gate_kernel(%arg0: i32, %arg1: memref<8x32xf32, #tpu.memory_space<vmem>>, %arg2: memref<8x32xf32, #tpu.memory_space<vmem>>, %arg3: memref<32x96xbf16, #tpu.memory_space<vmem>>, %arg4: memref<32x64xbf16, #tpu.memory_space<vmem>>, %arg5: memref<1x32xf32, #tpu.memory_space<vmem>>, %arg6: memref<32x32xbf16, #tpu.memory_space<vmem>>, %arg7: memref<8x32xf32, #tpu.memory_space<vmem>>) attributes {dimension_semantics = [#tpu.dimension_semantics<parallel>], iteration_bounds = array<i64: 2>, scalar_prefetch = 0 : i64, scratch_operands = 0 : i64, tpu.core_type = #tpu.core_type<tc>, window_params = [{transform_indices = @transform_0, window_bounds = array<i64: 8, 32>}, {transform_indices = @transform_1, window_bounds = array<i64: 8, 32>}, {pipeline_mode = #tpu.pipeline_mode<synchronous>, transform_indices = @transform_2, window_bounds = array<i64: 32, 96>}, {pipeline_mode = #tpu.pipeline_mode<synchronous>, transform_indices = @transform_3, window_bounds = array<i64: 32, 64>}, {pipeline_mode = #tpu.pipeline_mode<synchronous>, transform_indices = @transform_4, window_bounds = array<i64: 1, 32>}, {pipeline_mode = #tpu.pipeline_mode<synchronous>, transform_indices = @transform_5, window_bounds = array<i64: 32, 32>}, {transform_indices = @transform_6, window_bounds = array<i64: 8, 32>}]} {
    %c0 = arith.constant 0 : index
    %c0_0 = arith.constant 0 : index
    %0 = vector.load %arg2[%c0, %c0_0] : memref<8x32xf32, #tpu.memory_space<vmem>>, vector<8x32xf32>
    %1 = arith.truncf %0 : vector<8x32xf32> to vector<8x32xbf16>
    %c0_1 = arith.constant 0 : index
    %c0_2 = arith.constant 0 : index
    %2 = vector.load %arg1[%c0_1, %c0_2] : memref<8x32xf32, #tpu.memory_space<vmem>>, vector<8x32xf32>
    %3 = arith.truncf %2 : vector<8x32xf32> to vector<8x32xbf16>
    %c0_3 = arith.constant 0 : index
    %c0_4 = arith.constant 0 : index
    %4 = vector.load %arg3[%c0_3, %c0_4] : memref<32x96xbf16, #tpu.memory_space<vmem>>, vector<32x96xbf16>
    %cst = arith.constant dense<0.000000e+00> : vector<8x96xf32>
    %5 = tpu.matmul %1, %4, %cst {dimension_numbers = #tpu.dot_dimension_numbers<[1], [0], [0], [1], [0, 0, 1, 1], [], []>} : vector<8x32xbf16>, vector<32x96xbf16>, vector<8x96xf32> -> vector<8x96xf32>
    %c0_5 = arith.constant 0 : index
    %c0_6 = arith.constant 0 : index
    %6 = vector.load %arg4[%c0_5, %c0_6] : memref<32x64xbf16, #tpu.memory_space<vmem>>, vector<32x64xbf16>
    %cst_7 = arith.constant dense<0.000000e+00> : vector<8x64xf32>
    %7 = tpu.matmul %3, %6, %cst_7 {dimension_numbers = #tpu.dot_dimension_numbers<[1], [0], [0], [1], [0, 0, 1, 1], [], []>} : vector<8x32xbf16>, vector<32x64xbf16>, vector<8x64xf32> -> vector<8x64xf32>
    %c0_8 = arith.constant 0 : index
    %c0_9 = arith.constant 0 : index
    %8 = vector.load %arg1[%c0_8, %c0_9] : memref<8x32xf32, #tpu.memory_space<vmem>>, vector<8x32xf32>
    %9 = vector.extract_strided_slice %5 {offsets = [0, 0], sizes = [8, 32], strides = [1, 1]} : vector<8x96xf32> to vector<8x32xf32>
    %10 = vector.extract_strided_slice %7 {offsets = [0, 0], sizes = [8, 32], strides = [1, 1]} : vector<8x64xf32> to vector<8x32xf32>
    %11 = arith.addf %9, %10 : vector<8x32xf32>
    %cst_10 = arith.constant 5.000000e-01 : f32
    %12 = vector.broadcast %cst_10 : f32 to vector<8x32xf32>
    %13 = arith.mulf %12, %11 : vector<8x32xf32>
    %14 = math.tanh %13 : vector<8x32xf32>
    %cst_11 = arith.constant 1.000000e+00 : f32
    %15 = vector.broadcast %cst_11 : f32 to vector<8x32xf32>
    %16 = arith.addf %14, %15 : vector<8x32xf32>
    %cst_12 = arith.constant 5.000000e-01 : f32
    %17 = vector.broadcast %cst_12 : f32 to vector<8x32xf32>
    %18 = arith.mulf %17, %16 : vector<8x32xf32>
    %19 = arith.mulf %18, %8 : vector<8x32xf32>
    %20 = arith.truncf %19 : vector<8x32xf32> to vector<8x32xbf16>
    %21 = vector.extract_strided_slice %5 {offsets = [0, 64], sizes = [8, 32], strides = [1, 1]} : vector<8x96xf32> to vector<8x32xf32>
    %c0_13 = arith.constant 0 : index
    %c0_14 = arith.constant 0 : index
    %22 = vector.load %arg6[%c0_13, %c0_14] : memref<32x32xbf16, #tpu.memory_space<vmem>>, vector<32x32xbf16>
    %cst_15 = arith.constant dense<0.000000e+00> : vector<8x32xf32>
    %23 = tpu.matmul %20, %22, %cst_15 {dimension_numbers = #tpu.dot_dimension_numbers<[1], [0], [0], [1], [0, 0, 1, 1], [], []>} : vector<8x32xbf16>, vector<32x32xbf16>, vector<8x32xf32> -> vector<8x32xf32>
    %24 = arith.addf %21, %23 : vector<8x32xf32>
    %25 = vector.extract_strided_slice %5 {offsets = [0, 32], sizes = [8, 32], strides = [1, 1]} : vector<8x96xf32> to vector<8x32xf32>
    %26 = vector.extract_strided_slice %7 {offsets = [0, 32], sizes = [8, 32], strides = [1, 1]} : vector<8x64xf32> to vector<8x32xf32>
    %27 = arith.addf %25, %26 : vector<8x32xf32>
    %c0_16 = arith.constant 0 : index
    %c0_17 = arith.constant 0 : index
    %28 = vector.load %arg5[%c0_16, %c0_17] : memref<1x32xf32, #tpu.memory_space<vmem>>, vector<1x32xf32>
    %29 = vector.broadcast %28 : vector<1x32xf32> to vector<8x32xf32>
    %30 = arith.addf %27, %29 : vector<8x32xf32>
    %cst_18 = arith.constant 5.000000e-01 : f32
    %31 = vector.broadcast %cst_18 : f32 to vector<8x32xf32>
    %32 = arith.mulf %31, %30 : vector<8x32xf32>
    %33 = math.tanh %32 : vector<8x32xf32>
    %cst_19 = arith.constant 1.000000e+00 : f32
    %34 = vector.broadcast %cst_19 : f32 to vector<8x32xf32>
    %35 = arith.addf %33, %34 : vector<8x32xf32>
    %cst_20 = arith.constant 5.000000e-01 : f32
    %36 = vector.broadcast %cst_20 : f32 to vector<8x32xf32>
    %37 = arith.mulf %36, %35 : vector<8x32xf32>
    %38 = math.tanh %24 : vector<8x32xf32>
    %c0_21 = arith.constant 0 : index
    %c0_22 = arith.constant 0 : index
    %39 = vector.load %arg1[%c0_21, %c0_22] : memref<8x32xf32, #tpu.memory_space<vmem>>, vector<8x32xf32>
    %40 = arith.subf %38, %39 : vector<8x32xf32>
    %41 = arith.mulf %37, %40 : vector<8x32xf32>
    %42 = arith.addf %39, %41 : vector<8x32xf32>
    %c0_23 = arith.constant 0 : index
    %c0_24 = arith.constant 0 : index
    %43 = vector.load %arg7[%c0_23, %c0_24] : memref<8x32xf32, #tpu.memory_space<vmem>>, vector<8x32xf32>
    tpu.vector_store %arg7[%c0_23, %c0_24], %42 {strides = array<i32>} : memref<8x32xf32, #tpu.memory_space<vmem>>, vector<8x32xf32>,
    return
  }
  func.func @transform_0(%arg0: i32) -> (i32, i32) {
    %c0_i32 = arith.constant 0 : i32
    %c0_i32_0 = arith.constant 0 : i32
    return %arg0, %c0_i32 : i32, i32
  }
  func.func @transform_1(%arg0: i32) -> (i32, i32) {
    %c0_i32 = arith.constant 0 : i32
    %c0_i32_0 = arith.constant 0 : i32
    return %arg0, %c0_i32 : i32, i32
  }
  func.func @transform_2(%arg0: i32) -> (i32, i32) {
    %c0_i32 = arith.constant 0 : i32
    %c0_i32_0 = arith.constant 0 : i32
    %c0_i32_1 = arith.constant 0 : i32
    return %c0_i32, %c0_i32_0 : i32, i32
  }
  func.func @transform_3(%arg0: i32) -> (i32, i32) {
    %c0_i32 = arith.constant 0 : i32
    %c0_i32_0 = arith.constant 0 : i32
    %c0_i32_1 = arith.constant 0 : i32
    return %c0_i32, %c0_i32_0 : i32, i32
  }
  func.func @transform_4(%arg0: i32) -> (i32, i32) {
    %c0_i32 = arith.constant 0 : i32
    %c0_i32_0 = arith.constant 0 : i32
    %c0_i32_1 = arith.constant 0 : i32
    return %c0_i32, %c0_i32_0 : i32, i32
  }
  func.func @transform_5(%arg0: i32) -> (i32, i32) {
    %c0_i32 = arith.constant 0 : i32
    %c0_i32_0 = arith.constant 0 : i32
    %c0_i32_1 = arith.constant 0 : i32
    return %c0_i32, %c0_i32_0 : i32, i32
  }
  func.func @transform_6(%arg0: i32) -> (i32, i32) {
    %c0_i32 = arith.constant 0 : i32
    %c0_i32_0 = arith.constant 0 : i32
    return %arg0, %c0_i32 : i32, i32
  }
}

module attributes {stable_mosaic.version = 11 : i64} {
  func.func @_gru_gate_kernel(%arg0: i32, %arg1: memref<8x32xf32, #tpu.memory_space<vmem>>, %arg2: memref<8x32xf32, #tpu.memory_space<vmem>>, %arg3: memref<32x96xbf16, #tpu.memory_space<vmem>>, %arg4: memref<32x64xbf16, #tpu.memory_space<vmem>>, %arg5: memref<1x32xf32, #tpu.memory_space<vmem>>, %arg6: memref<32x32xbf16, #tpu.memory_space<vmem>>, %arg7: memref<8x32xf32, #tpu.memory_space<vmem>>) attributes {dimension_semantics = [#tpu.dimension_semantics<parallel>], iteration_bounds = array<i64: 2>, scalar_prefetch = 0 : i64, scratch_operands = 0 : i64, tpu.core_type = #tpu.core_type<tc>, window_params = [{transform_indices = @transform_0, window_bounds = array<i64: 8, 32>}, {transform_indices = @transform_1, window_bounds = array<i64: 8, 32>}, {pipeline_mode = #tpu.pipeline_mode<synchronous>, transform_indices = @transform_2, window_bounds = array<i64: 32, 96>}, {pipeline_mode = #tpu.pipeline_mode<synchronous>, transform_indices = @transform_3, window_bounds = array<i64: 32, 64>}, {pipeline_mode = #tpu.pipeline_mode<synchronous>, transform_indices = @transform_4, window_bounds = array<i64: 1, 32>}, {pipeline_mode = #tpu.pipeline_mode<synchronous>, transform_indices = @transform_5, window_bounds = array<i64: 32, 32>}, {transform_indices = @transform_6, window_bounds = array<i64: 8, 32>}]} {
    %c0 = arith.constant 0 : index
    %c0_0 = arith.constant 0 : index
    %0 = vector.load %arg2[%c0, %c0_0] : memref<8x32xf32, #tpu.memory_space<vmem>>, vector<8x32xf32>
    %1 = arith.truncf %0 : vector<8x32xf32> to vector<8x32xbf16>
    %c0_1 = arith.constant 0 : index
    %c0_2 = arith.constant 0 : index
    %2 = vector.load %arg1[%c0_1, %c0_2] : memref<8x32xf32, #tpu.memory_space<vmem>>, vector<8x32xf32>
    %3 = arith.truncf %2 : vector<8x32xf32> to vector<8x32xbf16>
    %c0_3 = arith.constant 0 : index
    %c0_4 = arith.constant 0 : index
    %4 = vector.load %arg3[%c0_3, %c0_4] : memref<32x96xbf16, #tpu.memory_space<vmem>>, vector<32x96xbf16>
    %cst = arith.constant dense<0.000000e+00> : vector<8x96xf32>
    %5 = tpu.matmul %1, %4, %cst {dimension_numbers = #tpu.dot_dimension_numbers<[1], [0], [0], [1], [0, 0, 1, 1], [], []>} : vector<8x32xbf16>, vector<32x96xbf16>, vector<8x96xf32> -> vector<8x96xf32>
    %c0_5 = arith.constant 0 : index
    %c0_6 = arith.constant 0 : index
    %6 = vector.load %arg4[%c0_5, %c0_6] : memref<32x64xbf16, #tpu.memory_space<vmem>>, vector<32x64xbf16>
    %cst_7 = arith.constant dense<0.000000e+00> : vector<8x64xf32>
    %7 = tpu.matmul %3, %6, %cst_7 {dimension_numbers = #tpu.dot_dimension_numbers<[1], [0], [0], [1], [0, 0, 1, 1], [], []>} : vector<8x32xbf16>, vector<32x64xbf16>, vector<8x64xf32> -> vector<8x64xf32>
    %c0_8 = arith.constant 0 : index
    %c0_9 = arith.constant 0 : index
    %8 = vector.load %arg1[%c0_8, %c0_9] : memref<8x32xf32, #tpu.memory_space<vmem>>, vector<8x32xf32>
    %9 = vector.extract_strided_slice %5 {offsets = [0, 0], sizes = [8, 32], strides = [1, 1]} : vector<8x96xf32> to vector<8x32xf32>
    %10 = vector.extract_strided_slice %7 {offsets = [0, 0], sizes = [8, 32], strides = [1, 1]} : vector<8x64xf32> to vector<8x32xf32>
    %11 = arith.addf %9, %10 : vector<8x32xf32>
    %cst_10 = arith.constant 5.000000e-01 : f32
    %12 = vector.broadcast %cst_10 : f32 to vector<8x32xf32>
    %13 = arith.mulf %12, %11 : vector<8x32xf32>
    %14 = math.tanh %13 : vector<8x32xf32>
    %cst_11 = arith.constant 1.000000e+00 : f32
    %15 = vector.broadcast %cst_11 : f32 to vector<8x32xf32>
    %16 = arith.addf %14, %15 : vector<8x32xf32>
    %cst_12 = arith.constant 5.000000e-01 : f32
    %17 = vector.broadcast %cst_12 : f32 to vector<8x32xf32>
    %18 = arith.mulf %17, %16 : vector<8x32xf32>
    %19 = arith.mulf %18, %8 : vector<8x32xf32>
    %20 = arith.truncf %19 : vector<8x32xf32> to vector<8x32xbf16>
    %21 = vector.extract_strided_slice %5 {offsets = [0, 64], sizes = [8, 32], strides = [1, 1]} : vector<8x96xf32> to vector<8x32xf32>
    %c0_13 = arith.constant 0 : index
    %c0_14 = arith.constant 0 : index
    %22 = vector.load %arg6[%c0_13, %c0_14] : memref<32x32xbf16, #tpu.memory_space<vmem>>, vector<32x32xbf16>
    %cst_15 = arith.constant dense<0.000000e+00> : vector<8x32xf32>
    %23 = tpu.matmul %20, %22, %cst_15 {dimension_numbers = #tpu.dot_dimension_numbers<[1], [0], [0], [1], [0, 0, 1, 1], [], []>} : vector<8x32xbf16>, vector<32x32xbf16>, vector<8x32xf32> -> vector<8x32xf32>
    %24 = arith.addf %21, %23 : vector<8x32xf32>
    %25 = vector.extract_strided_slice %5 {offsets = [0, 32], sizes = [8, 32], strides = [1, 1]} : vector<8x96xf32> to vector<8x32xf32>
    %26 = vector.extract_strided_slice %7 {offsets = [0, 32], sizes = [8, 32], strides = [1, 1]} : vector<8x64xf32> to vector<8x32xf32>
    %27 = arith.addf %25, %26 : vector<8x32xf32>
    %c0_16 = arith.constant 0 : index
    %c0_17 = arith.constant 0 : index
    %28 = vector.load %arg5[%c0_16, %c0_17] : memref<1x32xf32, #tpu.memory_space<vmem>>, vector<1x32xf32>
    %29 = vector.broadcast %28 : vector<1x32xf32> to vector<8x32xf32>
    %30 = arith.addf %27, %29 : vector<8x32xf32>
    %cst_18 = arith.constant 5.000000e-01 : f32
    %31 = vector.broadcast %cst_18 : f32 to vector<8x32xf32>
    %32 = arith.mulf %31, %30 : vector<8x32xf32>
    %33 = math.tanh %32 : vector<8x32xf32>
    %cst_19 = arith.constant 1.000000e+00 : f32
    %34 = vector.broadcast %cst_19 : f32 to vector<8x32xf32>
    %35 = arith.addf %33, %34 : vector<8x32xf32>
    %cst_20 = arith.constant 5.000000e-01 : f32
    %36 = vector.broadcast %cst_20 : f32 to vector<8x32xf32>
    %37 = arith.mulf %36, %35 : vector<8x32xf32>
    %38 = math.tanh %24 : vector<8x32xf32>
    %c0_21 = arith.constant 0 : index
    %c0_22 = arith.constant 0 : index
    %39 = vector.load %arg1[%c0_21, %c0_22] : memref<8x32xf32, #tpu.memory_space<vmem>>, vector<8x32xf32>
    %40 = arith.subf %38, %39 : vector<8x32xf32>
    %41 = arith.mulf %37, %40 : vector<8x32xf32>
    %42 = arith.addf %39, %41 : vector<8x32xf32>
    %c0_23 = arith.constant 0 : index
    %c0_24 = arith.constant 0 : index
    %43 = vector.load %arg7[%c0_23, %c0_24] : memref<8x32xf32, #tpu.memory_space<vmem>>, vector<8x32xf32>
    tpu.vector_store %arg7[%c0_23, %c0_24], %42 {strides = array<i32>} : memref<8x32xf32, #tpu.memory_space<vmem>>, vector<8x32xf32>,
    return
  }
  func.func @transform_0(%arg0: i32) -> (i32, i32) {
    %c0_i32 = arith.constant 0 : i32
    %c0_i32_0 = arith.constant 0 : i32
    return %arg0, %c0_i32 : i32, i32
  }
  func.func @transform_1(%arg0: i32) -> (i32, i32) {
    %c0_i32 = arith.constant 0 : i32
    %c0_i32_0 = arith.constant 0 : i32
    return %arg0, %c0_i32 : i32, i32
  }
  func.func @transform_2(%arg0: i32) -> (i32, i32) {
    %c0_i32 = arith.constant 0 : i32
    %c0_i32_0 = arith.constant 0 : i32
    %c0_i32_1 = arith.constant 0 : i32
    return %c0_i32, %c0_i32_0 : i32, i32
  }
  func.func @transform_3(%arg0: i32) -> (i32, i32) {
    %c0_i32 = arith.constant 0 : i32
    %c0_i32_0 = arith.constant 0 : i32
    %c0_i32_1 = arith.constant 0 : i32
    return %c0_i32, %c0_i32_0 : i32, i32
  }
  func.func @transform_4(%arg0: i32) -> (i32, i32) {
    %c0_i32 = arith.constant 0 : i32
    %c0_i32_0 = arith.constant 0 : i32
    %c0_i32_1 = arith.constant 0 : i32
    return %c0_i32, %c0_i32_0 : i32, i32
  }
  func.func @transform_5(%arg0: i32) -> (i32, i32) {
    %c0_i32 = arith.constant 0 : i32
    %c0_i32_0 = arith.constant 0 : i32
    %c0_i32_1 = arith.constant 0 : i32
    return %c0_i32, %c0_i32_0 : i32, i32
  }
  func.func @transform_6(%arg0: i32) -> (i32, i32) {
    %c0_i32 = arith.constant 0 : i32
    %c0_i32_0 = arith.constant 0 : i32
    return %arg0, %c0_i32 : i32, i32
  }
}

</mosaic_0001>

<llo_original>
// kernel: tpu_custom_call.1
$region0: #{tpu_custom_call.1}
  #allocation0 [shape = 'u32[]', space=smem, size = 0x4, offset = 0x4, fixed_abs, tag = 'smem constant byte address 0x4 - core index']
  #allocation1 [shape = 'u32[72,128]{1,0:T(1,128)}', space=vmem, size = 0x9000, scoped, tag = 'internal scratch']
  %s0 = inlined_call_operand.hbm [shape: f32[16,32], index: 0, kind: input, shape index: {}]
  %s1 = inlined_call_operand.hbm [shape: f32[16,32], index: 1, kind: input, shape index: {}]
  %s2 = inlined_call_operand.hbm [shape: bf16[32,96], index: 2, kind: input, shape index: {}]
  %s3 = inlined_call_operand.hbm [shape: bf16[32,64], index: 3, kind: input, shape index: {}]
  %s4 = inlined_call_operand.vmem [shape: f32[1,32], index: 4, kind: input, shape index: {}]
  %s5 = inlined_call_operand.hbm [shape: bf16[32,32], index: 5, kind: input, shape index: {}]
  %s6 = inlined_call_operand.hbm [shape: f32[16,32], index: 6, kind: output, shape index: {}]
  %s7 = sld [smem:[#allocation0]]
  $region77: #{tpu_custom_call.1} parent=0
    _
  %s9 = ssub.s32 1, %s7
  %s10 = scalar_select 0, %s9, %s7
  $region1: #{tpu_custom_call.1} parent=0
    #allocation2 [shape = 'u8[8192]{0}', space=vmem, size = 0x2000, scoped, tag = 'input window, operand 0']
    #allocation3 [shape = 's32[2]{0}', space=sflag, size = 0x8, scoped, tag = 'scoped memory for tpu_custom_call.1']
    #allocation4 [shape = 's32[2]{0}', space=sflag, size = 0x8, scoped, tag = 'scoped memory for tpu_custom_call.1']
    #allocation5 [shape = 'u8[8192]{0}', space=vmem, size = 0x2000, scoped, tag = 'input window, operand 1']
    #allocation6 [shape = 's32[2]{0}', space=sflag, size = 0x8, scoped, tag = 'scoped memory for tpu_custom_call.1']
    #allocation7 [shape = 'u8[8192]{0}', space=vmem, size = 0x2000, scoped, tag = 'input window, operand 2, single buffered']
    #allocation8 [shape = 'u8[8192]{0}', space=vmem, size = 0x2000, scoped, tag = 'input window, operand 3, single buffered']
    #allocation9 [shape = 's32[1]{0}', space=sflag, size = 0x4, scoped, tag = 'scoped memory for tpu_custom_call.1']
    #allocation10 [shape = 'u8[8192]{0}', space=vmem, size = 0x2000, scoped, tag = 'input window, operand 5, single buffered']
    #allocation11 [shape = 'u8[8192]{0}', space=vmem, size = 0x2000, scoped, tag = 'output window, operand 0']
    %11 = vsyncpa [#allocation3], 0
    %s12 = scalar_lea.sflag [#allocation3], 1
    %13 = vsyncpa %s12, 0
    %14 = vsyncpa [#allocation6], 0
    %s15 = scalar_lea.sflag [#allocation6], 1
    %16 = vsyncpa %s15, 0
    %17 = vsyncpa [#allocation9], 0
    %18 = vsyncpa [#allocation4], 0
    %s19 = scalar_lea.sflag [#allocation4], 1
    %20 = vsyncpa %s19, 0
    loop: start=0, step=1, limit=4
    $region2: #{tpu_custom_call.1} parent=1 // loop_pre_header
      _
    $region3: #{tpu_custom_call.1} parent=1 // loop_header
      %s22 = sphi 0, %s26
      %p23 = scmp.ge.s32.totalorder %s22, 4
      %s32 = sphi 0, %s34
      %s35 = sphi 0, %s32
      %s36 = sphi 0, %s35
      %s52 = sphi 0, %s36
      %s58 = sphi 0, %s60
      %s61 = sphi 0, %s58
      %s62 = sphi 0, %s61
      %s78 = sphi 0, %s62
      %s82 = sphi 0, %s82
      %s84 = sphi 0, %s82
      %s85 = sphi 0, %s84
      %s99 = sphi 0, %s85
      %s103 = sphi 0, %s103
      %s105 = sphi 0, %s103
      %s106 = sphi 0, %s105
      %s120 = sphi 0, %s106
      %s124 = sphi 0, %s124
      %s126 = sphi 0, %s124
      %s127 = sphi 0, %s126
      %s141 = sphi 0, %s127
      %s145 = sphi 0, %s145
      %s147 = sphi 0, %s145
      %s148 = sphi 0, %s147
      %s162 = sphi 0, %s148
      %s168 = sphi 0, %s170
      %s171 = sphi 0, %s168
      %s172 = sphi 0, %s171
      %s188 = sphi 0, %s172
    $region4: #{tpu_custom_call.1} parent=1 // loop_header_branch
      %25 = sbr.rel (%p23) target = $region8
    $region5: #{tpu_custom_call.1} parent=1 // loop_body
      %s27 = ssub.s32 %s22, 1
      %s28 = ssub.s32 %s22, 2
      %s29 = sadd.s32 %s22, 1
      %s30 = ssub.s32 %s22, %s29
      %p31 = scmp.eq.s32.totalorder %s30, 0
      %s33 = sadd.s32 %s32, 1
      %s34 = scalar_select %p31, %s32, %s33
      %p37 = pneg %p31
      %p38 = scmp.eq.s32.totalorder %s22, 1
      %p39 = por %p37, %p38
      %p40 = scmp.ne.s32.totalorder %s32, %s35
      %p41 = scmp.eq.s32.totalorder %s22, 0
      %p42 = por %p40, %p41
      %p43 = scmp.ne.s32.totalorder %s32, %s35
      %p44 = scmp.eq.s32.totalorder %s27, 1
      %p45 = por %p43, %p44
      %p46 = scmp.ne.s32.totalorder %s35, %s36
      %p47 = scmp.eq.s32.totalorder %s27, 0
      %p48 = por %p46, %p47
      %p49 = scmp.ne.s32.totalorder %s35, %s36
      %p50 = scmp.eq.s32.totalorder %s28, 1
      %p51 = por %p49, %p50
      %p53 = scmp.ne.s32.totalorder %s36, %s52
      %p54 = scmp.eq.s32.totalorder %s28, 0
      %p55 = por %p53, %p54
      %s56 = ssub.s32 %s22, %s29
      %p57 = scmp.eq.s32.totalorder %s56, 0
      %s59 = sadd.s32 %s58, 1
      %s60 = scalar_select %p57, %s58, %s59
      %p63 = pneg %p57
      %p64 = scmp.eq.s32.totalorder %s22, 1
      %p65 = por %p63, %p64
      %p66 = scmp.ne.s32.totalorder %s58, %s61
      %p67 = scmp.eq.s32.totalorder %s22, 0
      %p68 = por %p66, %p67
      %p69 = scmp.ne.s32.totalorder %s58, %s61
      %p70 = scmp.eq.s32.totalorder %s27, 1
      %p71 = por %p69, %p70
      %p72 = scmp.ne.s32.totalorder %s61, %s62
      %p73 = scmp.eq.s32.totalorder %s27, 0
      %p74 = por %p72, %p73
      %p75 = scmp.ne.s32.totalorder %s61, %s62
      %p76 = scmp.eq.s32.totalorder %s28, 1
      %p77 = por %p75, %p76
      %p79 = scmp.ne.s32.totalorder %s62, %s78
      %p80 = scmp.eq.s32.totalorder %s28, 0
      %p81 = por %p79, %p80
      %s83 = sadd.s32 %s82, 1
      %p86 = scmp.eq.s32.totalorder %s22, 1
      %p87 = scmp.ne.s32.totalorder %s82, %s84
      %p88 = scmp.eq.s32.totalorder %s22, 0
      %p89 = por %p87, %p88
      %p90 = scmp.ne.s32.totalorder %s82, %s84
      %p91 = scmp.eq.s32.totalorder %s27, 1
      %p92 = por %p90, %p91
      %p93 = scmp.ne.s32.totalorder %s84, %s85
      %p94 = scmp.eq.s32.totalorder %s27, 0
      %p95 = por %p93, %p94
      %p96 = scmp.ne.s32.totalorder %s84, %s85
      %p97 = scmp.eq.s32.totalorder %s28, 1
      %p98 = por %p96, %p97
      %p100 = scmp.ne.s32.totalorder %s85, %s99
      %p101 = scmp.eq.s32.totalorder %s28, 0
      %p102 = por %p100, %p101
      %s104 = sadd.s32 %s103, 1
      %p107 = scmp.eq.s32.totalorder %s22, 1
      %p108 = scmp.ne.s32.totalorder %s103, %s105
      %p109 = scmp.eq.s32.totalorder %s22, 0
      %p110 = por %p108, %p109
      %p111 = scmp.ne.s32.totalorder %s103, %s105
      %p112 = scmp.eq.s32.totalorder %s27, 1
      %p113 = por %p111, %p112
      %p114 = scmp.ne.s32.totalorder %s105, %s106
      %p115 = scmp.eq.s32.totalorder %s27, 0
      %p116 = por %p114, %p115
      %p117 = scmp.ne.s32.totalorder %s105, %s106
      %p118 = scmp.eq.s32.totalorder %s28, 1
      %p119 = por %p117, %p118
      %p121 = scmp.ne.s32.totalorder %s106, %s120
      %p122 = scmp.eq.s32.totalorder %s28, 0
      %p123 = por %p121, %p122
      %s125 = sadd.s32 %s124, 1
      %p128 = scmp.eq.s32.totalorder %s22, 1
      %p129 = scmp.ne.s32.totalorder %s124, %s126
      %p130 = scmp.eq.s32.totalorder %s22, 0
      %p131 = por %p129, %p130
      %p132 = scmp.ne.s32.totalorder %s124, %s126
      %p133 = scmp.eq.s32.totalorder %s27, 1
      %p134 = por %p132, %p133
      %p135 = scmp.ne.s32.totalorder %s126, %s127
      %p136 = scmp.eq.s32.totalorder %s27, 0
      %p137 = por %p135, %p136
      %p138 = scmp.ne.s32.totalorder %s126, %s127
      %p139 = scmp.eq.s32.totalorder %s28, 1
      %p140 = por %p138, %p139
      %p142 = scmp.ne.s32.totalorder %s127, %s141
      %p143 = scmp.eq.s32.totalorder %s28, 0
      %p144 = por %p142, %p143
      %s146 = sadd.s32 %s145, 1
      %p149 = scmp.eq.s32.totalorder %s22, 1
      %p150 = scmp.ne.s32.totalorder %s145, %s147
      %p151 = scmp.eq.s32.totalorder %s22, 0
      %p152 = por %p150, %p151
      %p153 = scmp.ne.s32.totalorder %s145, %s147
      %p154 = scmp.eq.s32.totalorder %s27, 1
      %p155 = por %p153, %p154
      %p156 = scmp.ne.s32.totalorder %s147, %s148
      %p157 = scmp.eq.s32.totalorder %s27, 0
      %p158 = por %p156, %p157
      %p159 = scmp.ne.s32.totalorder %s147, %s148
      %p160 = scmp.eq.s32.totalorder %s28, 1
      %p161 = por %p159, %p160
      %p163 = scmp.ne.s32.totalorder %s148, %s162
      %p164 = scmp.eq.s32.totalorder %s28, 0
      %p165 = por %p163, %p164
      %s166 = ssub.s32 %s22, %s29
      %p167 = scmp.eq.s32.totalorder %s166, 0
      %s169 = sadd.s32 %s168, 1
      %s170 = scalar_select %p167, %s168, %s169
      %p173 = pneg %p167
      %p174 = scmp.eq.s32.totalorder %s22, 1
      %p175 = por %p173, %p174
      %p176 = scmp.ne.s32.totalorder %s168, %s171
      %p177 = scmp.eq.s32.totalorder %s22, 0
      %p178 = por %p176, %p177
      %p179 = scmp.ne.s32.totalorder %s168, %s171
      %p180 = scmp.eq.s32.totalorder %s27, 1
      %p181 = por %p179, %p180
      %p182 = scmp.ne.s32.totalorder %s171, %s172
      %p183 = scmp.eq.s32.totalorder %s27, 0
      %p184 = por %p182, %p183
      %p185 = scmp.ne.s32.totalorder %s171, %s172
      %p186 = scmp.eq.s32.totalorder %s28, 1
      %p187 = por %p185, %p186
      %p189 = scmp.ne.s32.totalorder %s172, %s188
      %p190 = scmp.eq.s32.totalorder %s28, 0
      %p191 = por %p189, %p190
      %p192 = scmp.le.s32.totalorder 1, %s22
      %p193 = scmp.lt.s32.totalorder %s22, 3
      %p194 = pnand %p192, %p193
      %p195 = pneg %p194
      // Predicated region
      $region9: #{tpu_custom_call.1} parent=5 // pred_check
        _
      $region10: #{tpu_custom_call.1} parent=5 // pred_check_branch
        %197 = sbr.rel (%p194) target = $region12
      $region11: #{tpu_custom_call.1} parent=5 // pred_region
        %s198 = ssub.s32 %s22, 1
        // Predicated region
        $region13: #{tpu_custom_call.1} parent=11 // pred_check
          %p199 = pneg %p95
        $region14: #{tpu_custom_call.1} parent=11 // pred_check_branch
          %201 = sbr.rel (%p199) target = $region16
        $region15: #{tpu_custom_call.1} parent=11 // pred_region
          %203 = vsyncadd [#allocation6], 0
          %s204 = sshll.u32 %s2, 4
          %s205 = int_to_ptr.hbm [resolvable:$true] %s204
          %s206 = sshll.u32 [#allocation7], 4
          %s207 = int_to_ptr.vmem [resolvable:$true] %s206
          %212 = dma.hbm_to_vmem [thread:$0]  %s205, 256, %s207, [#allocation6], 64, 64, 4
        $region16: #{tpu_custom_call.1} parent=11 // pred_fallthru
          _
        // Predicated region
        $region17: #{tpu_custom_call.1} parent=11 // pred_check
          %p213 = pneg %p116
        $region18: #{tpu_custom_call.1} parent=11 // pred_check_branch
          %215 = sbr.rel (%p213) target = $region20
        $region19: #{tpu_custom_call.1} parent=11 // pred_region
          %217 = vsyncadd [#allocation9], 0
          %s218 = sshll.u32 %s3, 4
          %s219 = int_to_ptr.hbm [resolvable:$true] %s218
          %s220 = sshll.u32 [#allocation8], 4
          %s221 = int_to_ptr.vmem [resolvable:$true] %s220
          %226 = dma.hbm_to_vmem [thread:$0]  %s219, 256, %s221, [#allocation9], 64, 64, 4
        $region20: #{tpu_custom_call.1} parent=11 // pred_fallthru
          _
        // Predicated region
        $region21: #{tpu_custom_call.1} parent=11 // pred_check
          %p227 = pneg %p137
        $region22: #{tpu_custom_call.1} parent=11 // pred_check_branch
          %229 = sbr.rel (%p227) target = $region24
        $region23: #{tpu_custom_call.1} parent=11 // pred_region
          _
        $region24: #{tpu_custom_call.1} parent=11 // pred_fallthru
          _
        // Predicated region
        $region25: #{tpu_custom_call.1} parent=11 // pred_check
          %p230 = pneg %p158
        $region26: #{tpu_custom_call.1} parent=11 // pred_check_branch
          %232 = sbr.rel (%p230) target = $region28
        $region27: #{tpu_custom_call.1} parent=11 // pred_region
          %234 = vsyncadd [#allocation9], 0
          %s235 = sshll.u32 %s5, 4
          %s236 = int_to_ptr.hbm [resolvable:$true] %s235
          %s237 = sshll.u32 [#allocation10], 4
          %s238 = int_to_ptr.vmem [resolvable:$true] %s237
          %243 = dma.hbm_to_vmem [thread:$0]  %s236, 256, %s238, [#allocation9], 64, 64, 4
        $region28: #{tpu_custom_call.1} parent=11 // pred_fallthru
          _
      $region12: #{tpu_custom_call.1} parent=5 // pred_fallthru
        _
      %p244 = scmp.lt.s32.totalorder %s22, 2
      // Predicated region
      $region29: #{tpu_custom_call.1} parent=5 // pred_check
        %p245 = pneg %p244
      $region30: #{tpu_custom_call.1} parent=5 // pred_check_branch
        %247 = sbr.rel (%p245) target = $region32
      $region31: #{tpu_custom_call.1} parent=5 // pred_region
        // Predicated region
        $region33: #{tpu_custom_call.1} parent=31 // pred_check
          %p248 = pneg %p42
        $region34: #{tpu_custom_call.1} parent=31 // pred_check_branch
          %250 = sbr.rel (%p248) target = $region36
        $region35: #{tpu_custom_call.1} parent=31 // pred_region
          %s251 = sand.u32 %s32, 1
          %s252 = scalar_lea.sflag [#allocation3], %s251
          %s253 = sand.u32 %s32, 1
          %s254 = smul.addr %s253, 8
          %s255 = scalar_lea.vmem [#allocation2], %s254
          %257 = vsyncadd %s252, 0
          %s258 = smul.addr %s22, 8
          %s259 = scalar_lea.hbm %s0, %s258
          %s261 = sshll.u32 %s259, 4
          %s262 = int_to_ptr.hbm [resolvable:$true] %s261
          %s263 = sshll.u32 %s255, 4
          %s264 = int_to_ptr.vmem [resolvable:$true] %s263
          %266 = dma.hbm_to_vmem [thread:$0]  %s262, 128, %s264, %s252
        $region36: #{tpu_custom_call.1} parent=31 // pred_fallthru
          _
        // Predicated region
        $region37: #{tpu_custom_call.1} parent=31 // pred_check
          %p267 = pneg %p68
        $region38: #{tpu_custom_call.1} parent=31 // pred_check_branch
          %269 = sbr.rel (%p267) target = $region40
        $region39: #{tpu_custom_call.1} parent=31 // pred_region
          %s270 = sand.u32 %s22, 1
          %s271 = scalar_lea.sflag [#allocation6], %s270
          %s272 = sand.u32 %s58, 1
          %s273 = smul.addr %s272, 8
          %s274 = scalar_lea.vmem [#allocation5], %s273
          %276 = vsyncadd %s271, 0
          %s277 = smul.addr %s22, 8
          %s278 = scalar_lea.hbm %s1, %s277
          %s280 = sshll.u32 %s278, 4
          %s281 = int_to_ptr.hbm [resolvable:$true] %s280
          %s282 = sshll.u32 %s274, 4
          %s283 = int_to_ptr.vmem [resolvable:$true] %s282
          %285 = dma.hbm_to_vmem [thread:$0]  %s281, 128, %s283, %s271
        $region40: #{tpu_custom_call.1} parent=31 // pred_fallthru
          _
      $region32: #{tpu_custom_call.1} parent=5 // pred_fallthru
        _
      %p286 = scmp.le.s32.totalorder 1, %s22
      %p287 = scmp.lt.s32.totalorder %s22, 3
      %p288 = pnand %p286, %p287
      %p289 = pneg %p288
      // Predicated region
      $region41: #{tpu_custom_call.1} parent=5 // pred_check
        _
      $region42: #{tpu_custom_call.1} parent=5 // pred_check_branch
        %291 = sbr.rel (%p288) target = $region44
      $region43: #{tpu_custom_call.1} parent=5 // pred_region
        %s292 = ssub.s32 %s22, 1
        %s293 = sand.u32 %s35, 1
        %s294 = scalar_lea.sflag [#allocation3], %s293
        %s295 = sand.u32 %s35, 1
        %s296 = smul.addr %s295, 8
        %s297 = scalar_lea.vmem [#allocation2], %s296
        // Predicated region
        $region45: #{tpu_custom_call.1} parent=43 // pred_check
          %p298 = pneg %p48
        $region46: #{tpu_custom_call.1} parent=43 // pred_check_branch
          %300 = sbr.rel (%p298) target = $region48
        $region47: #{tpu_custom_call.1} parent=43 // pred_region
          %302 = dma.done %s294, 128
        $region48: #{tpu_custom_call.1} parent=43 // pred_fallthru
          _
        %s303 = sand.u32 %s27, 1
        %s304 = scalar_lea.sflag [#allocation6], %s303
        %s305 = sand.u32 %s61, 1
        %s306 = smul.addr %s305, 8
        %s307 = scalar_lea.vmem [#allocation5], %s306
        // Predicated region
        $region49: #{tpu_custom_call.1} parent=43 // pred_check
          %p308 = pneg %p74
        $region50: #{tpu_custom_call.1} parent=43 // pred_check_branch
          %310 = sbr.rel (%p308) target = $region52
        $region51: #{tpu_custom_call.1} parent=43 // pred_region
          %312 = dma.done %s304, 128
        $region52: #{tpu_custom_call.1} parent=43 // pred_fallthru
          _
        // Predicated region
        $region53: #{tpu_custom_call.1} parent=43 // pred_check
          %p313 = pneg %p95
        $region54: #{tpu_custom_call.1} parent=43 // pred_check_branch
          %315 = sbr.rel (%p313) target = $region56
        $region55: #{tpu_custom_call.1} parent=43 // pred_region
          %317 = dma.done [#allocation6], 256
        $region56: #{tpu_custom_call.1} parent=43 // pred_fallthru
          _
        // Predicated region
        $region57: #{tpu_custom_call.1} parent=43 // pred_check
          %p318 = pneg %p116
        $region58: #{tpu_custom_call.1} parent=43 // pred_check_branch
          %320 = sbr.rel (%p318) target = $region60
        $region59: #{tpu_custom_call.1} parent=43 // pred_region
          %322 = dma.done [#allocation9], 256
        $region60: #{tpu_custom_call.1} parent=43 // pred_fallthru
          _
        // Predicated region
        $region61: #{tpu_custom_call.1} parent=43 // pred_check
          %p323 = pneg %p158
        $region62: #{tpu_custom_call.1} parent=43 // pred_check_branch
          %325 = sbr.rel (%p323) target = $region64
        $region63: #{tpu_custom_call.1} parent=43 // pred_region
          %327 = dma.done [#allocation9], 256
        $region64: #{tpu_custom_call.1} parent=43 // pred_fallthru
          _
        %s328 = sand.u32 %s35, 1
        %s329 = scalar_lea.sflag [#allocation3], %s328
        %s330 = sand.u32 %s35, 1
        %s331 = smul.addr %s330, 8
        %s332 = scalar_lea.vmem [#allocation2], %s331
        %p333 = pneg %p48
        %p334 = pneg %p45
        %s335 = sand.u32 %s27, 1
        %s336 = scalar_lea.sflag [#allocation6], %s335
        %s337 = sand.u32 %s61, 1
        %s338 = smul.addr %s337, 8
        %s339 = scalar_lea.vmem [#allocation5], %s338
        %p340 = pneg %p74
        %p341 = pneg %p71
        %p342 = pneg %p95
        %p343 = pneg %p92
        %p344 = pneg %p116
        %p345 = pneg %p113
        %p346 = pneg %p137
        %p347 = pneg %p134
        %p348 = pneg %p158
        %p349 = pneg %p155
        %p350 = pneg %p184
        %p351 = pneg %p181
        %s352 = sand.u32 %s171, 1
        %s353 = scalar_lea.sflag [#allocation4], %s352
        %s354 = sand.u32 %s171, 1
        %s355 = smul.addr %s354, 8
        %s356 = scalar_lea.vmem [#allocation11], %s355
        %v358 = vld [vmem:[%s307] sm:$0xff]
        %v359 = vpack.c.bf16 %v358, %v358
        %v360 = vld [vmem:[%s297] sm:$0xff]
        %v361 = vpack.c.bf16 %v360, %v360
        %v362 = vld [vmem:[#allocation7] sm:$0xf]
        %v363 = vld [vmem:[#allocation7 + $0x4] sm:$0xf]
        %v364 = vld [vmem:[#allocation7 + $0x8] sm:$0xf]
        %v365 = vld [vmem:[#allocation7 + $0xc] sm:$0xf]
        %v370 = vunpack.c.l.b16 %v362
        %v371 = vunpack.c.l.b16 %v363
        %v372 = vunpack.c.l.b16 %v364
        %v373 = vunpack.c.l.b16 %v365
        %v374 = vpack.c.b16 %v371, %v370
        %v375 = vpack.c.b16 %v373, %v372
        %vm378 = vcmask 261120
        %v380 = vsel %vm378, %v359, 0
        %382 = vmatpush.bf16.msra.mxu0 0
        %383 = vmatpush.bf16.msra.mxu0 0
        %384 = vmatpush.bf16.msra.mxu0 0
        %385 = vmatpush.bf16.msra.mxu0 0
        %386 = vmatpush.bf16.msra.mxu0 0
        %387 = vmatpush.bf16.msra.mxu0 0
        %388 = vmatpush.bf16.msra.mxu0 %v375
        %389 = vmatpush.bf16.msra.mxu0 %v374
        %390 = vmatmul.bf16.gmra.mxu0 %v380
        %v391 = vpop.f32.mrf.mxu0
        %v392 = vadd.f32 0.0, %v391
        %v393 = vpop.f32.mrf.mxu0
        %394 = vdwg.mxu0
        %v395 = vld [vmem:[#allocation8] sm:$0xf]
        %v396 = vld [vmem:[#allocation8 + $0x4] sm:$0xf]
        %v397 = vld [vmem:[#allocation8 + $0x8] sm:$0xf]
        %v398 = vld [vmem:[#allocation8 + $0xc] sm:$0xf]
        %v403 = vunpack.c.l.b16 %v395
        %v404 = vunpack.c.l.b16 %v396
        %v405 = vunpack.c.l.b16 %v397
        %v406 = vunpack.c.l.b16 %v398
        %v407 = vpack.c.b16 %v404, %v403
        %v408 = vpack.c.b16 %v406, %v405
        %v412 = vsel %vm378, %v361, 0
        %414 = vmatpush.bf16.msra.mxu0 0
        %415 = vmatpush.bf16.msra.mxu0 0
        %416 = vmatpush.bf16.msra.mxu0 0
        %417 = vmatpush.bf16.msra.mxu0 0
        %418 = vmatpush.bf16.msra.mxu0 0
        %419 = vmatpush.bf16.msra.mxu0 0
        %420 = vmatpush.bf16.msra.mxu0 %v408
        %421 = vmatpush.bf16.msra.mxu0 %v407
        %422 = vmatmul.bf16.gmra.mxu0 %v412
        %v423 = vpop.f32.mrf.mxu0
        %v424 = vadd.f32 0.0, %v423
        %v425 = vpop.f32.mrf.mxu0
        %426 = vdwg.mxu0
        %v427 = vadd.f32 %v392, %v424
        %v428 = vmul.f32 %v427, 0.5
        %v429 = vtanh.pop %v428
        %v430 = vadd.f32 %v429, 1.0
        %v431 = vmul.f32 %v430, 0.5
        %v432 = vmul.f32 %v431, %v360
        %v433 = vpack.c.bf16 %v432, %v432
        %v434 = vld [vmem:[#allocation10] sm:$0xf]
        %v435 = vld [vmem:[#allocation10 + $0x4] sm:$0xf]
        %v436 = vld [vmem:[#allocation10 + $0x8] sm:$0xf]
        %v437 = vld [vmem:[#allocation10 + $0xc] sm:$0xf]
        %v442 = vunpack.c.l.b16 %v434
        %v443 = vunpack.c.l.b16 %v435
        %v444 = vunpack.c.l.b16 %v436
        %v445 = vunpack.c.l.b16 %v437
        %v446 = vpack.c.b16 %v443, %v442
        %v447 = vpack.c.b16 %v445, %v444
        %v451 = vsel %vm378, %v433, 0
        %453 = vmatpush.bf16.msra.mxu0 0
        %454 = vmatpush.bf16.msra.mxu0 0
        %455 = vmatpush.bf16.msra.mxu0 0
        %456 = vmatpush.bf16.msra.mxu0 0
        %457 = vmatpush.bf16.msra.mxu0 0
        %458 = vmatpush.bf16.msra.mxu0 0
        %459 = vmatpush.bf16.msra.mxu0 %v447
        %460 = vmatpush.bf16.msra.mxu0 %v446
        %461 = vmatmul.bf16.gmra.mxu0 %v451
        %v462 = vpop.f32.mrf.mxu0
        %v463 = vadd.f32 0.0, %v462
        %v464 = vpop.f32.mrf.mxu0
        %465 = vdwg.mxu0
        %467 = vrot.lane.b32.xlu0 %v463, 64
        %v468 = vpop.permute.xlu0 %467
        %v470 = vadd.f32 %v392, %v468
        %v471 = vld [vmem:[%s4] sm:$0x1]
        %v473 = vperm.slane %v471, 0
        %474 = vrot.lane.b32.xlu0 %v473, 32
        %v475 = vpop.permute.xlu0 %474
        %v477 = vadd.f32 %v427, %v475
        %v478 = vmul.f32 %v477, 0.5
        %v479 = vtanh.pop %v478
        %v480 = vadd.f32 %v479, 1.0
        %v481 = vmul.f32 %v480, 0.5
        %v482 = vtanh.pop %v470
        %484 = vrot.lane.b32.xlu0 %v360, 64
        %v485 = vpop.permute.xlu0 %484
        %v487 = vsub.f32 %v482, %v485
        %489 = vrot.lane.b32.xlu0 %v487, 96
        %v490 = vpop.permute.xlu0 %489
        %v492 = vmul.f32 %v481, %v490
        %494 = vrot.lane.b32.xlu0 %v492, 96
        %v495 = vpop.permute.xlu0 %494
        %v497 = vadd.f32 %v360, %v495
        %498 = vst.msk [vmem:[%s356] sm:$0xff] %vm378, %v497
        %s499 = sand.u32 %s171, 1
        %s500 = scalar_lea.sflag [#allocation4], %s499
        %s501 = sand.u32 %s171, 1
        %s502 = smul.addr %s501, 8
        %s503 = scalar_lea.vmem [#allocation11], %s502
        // Predicated region
        $region65: #{tpu_custom_call.1} parent=43 // pred_check
          %p504 = pneg %p181
        $region66: #{tpu_custom_call.1} parent=43 // pred_check_branch
          %506 = sbr.rel (%p504) target = $region68
        $region67: #{tpu_custom_call.1} parent=43 // pred_region
          %508 = vsyncadd %s500, 0
          %s509 = smul.addr %s27, 8
          %s510 = scalar_lea.hbm %s6, %s509
          %s512 = sshll.u32 %s503, 4
          %s513 = int_to_ptr.vmem [resolvable:$true] %s512
          %s514 = sshll.u32 %s510, 4
          %s515 = int_to_ptr.hbm [resolvable:$true] %s514
          %517 = dma.vmem_to_hbm [thread:$0]  %s513, 128, %s515, %s500
        $region68: #{tpu_custom_call.1} parent=43 // pred_fallthru
          _
      $region44: #{tpu_custom_call.1} parent=5 // pred_fallthru
        _
      %p518 = scmp.le.s32.totalorder 2, %s22
      // Predicated region
      $region69: #{tpu_custom_call.1} parent=5 // pred_check
        %p519 = pneg %p518
      $region70: #{tpu_custom_call.1} parent=5 // pred_check_branch
        %521 = sbr.rel (%p519) target = $region72
      $region71: #{tpu_custom_call.1} parent=5 // pred_region
        %s522 = ssub.s32 %s22, 2
        // Predicated region
        $region73: #{tpu_custom_call.1} parent=71 // pred_check
          %p523 = pneg %p187
        $region74: #{tpu_custom_call.1} parent=71 // pred_check_branch
          %525 = sbr.rel (%p523) target = $region76
        $region75: #{tpu_custom_call.1} parent=71 // pred_region
          %s526 = sand.u32 %s172, 1
          %s527 = scalar_lea.sflag [#allocation4], %s526
          %s528 = sand.u32 %s172, 1
          %s529 = smul.addr %s528, 8
          %s530 = scalar_lea.vmem [#allocation11], %s529
          %532 = dma.done %s527, 128
        $region76: #{tpu_custom_call.1} parent=71 // pred_fallthru
          _
      $region72: #{tpu_custom_call.1} parent=5 // pred_fallthru
        _
    $region6: #{tpu_custom_call.1} parent=1 // loop_footer
      %s26 = sadd.s32 1, %s22
    $region7: #{tpu_custom_call.1} parent=1 // loop_footer_branch
      %21 = sbr.rel target = $region3
    $region8: #{tpu_custom_call.1} parent=1 // loop_exit
      _
    %533 = vsyncpa [#allocation3], 1
    %s534 = scalar_lea.sflag [#allocation3], 1
    %535 = vsyncpa %s534, 1
    %536 = vsyncpa [#allocation6], 1
    %s537 = scalar_lea.sflag [#allocation6], 1
    %538 = vsyncpa %s537, 1
    %539 = vsyncpa [#allocation9], 1
    %540 = vsyncpa [#allocation4], 1
    %s541 = scalar_lea.sflag [#allocation4], 1
    %542 = vsyncpa %s541, 1

// kernel: tpu_custom_call.1
$region0: #{tpu_custom_call.1}
  #allocation0 [shape = 'u32[]', space=smem, size = 0x4, offset = 0x4, fixed_abs, tag = 'smem constant byte address 0x4 - core index']
  #allocation1 [shape = 'u32[72,128]{1,0:T(1,128)}', space=vmem, size = 0x9000, scoped, tag = 'internal scratch']
  %s0 = inlined_call_operand.hbm [shape: f32[16,32], index: 0, kind: input, shape index: {}]
  %s1 = inlined_call_operand.hbm [shape: f32[16,32], index: 1, kind: input, shape index: {}]
  %s2 = inlined_call_operand.hbm [shape: bf16[32,96], index: 2, kind: input, shape index: {}]
  %s3 = inlined_call_operand.hbm [shape: bf16[32,64], index: 3, kind: input, shape index: {}]
  %s4 = inlined_call_operand.vmem [shape: f32[1,32], index: 4, kind: input, shape index: {}]
  %s5 = inlined_call_operand.hbm [shape: bf16[32,32], index: 5, kind: input, shape index: {}]
  %s6 = inlined_call_operand.hbm [shape: f32[16,32], index: 6, kind: output, shape index: {}]
  %s7 = sld [smem:[#allocation0]]
  $region77: #{tpu_custom_call.1} parent=0
    _
  %s9 = ssub.s32 1, %s7
  %s10 = scalar_select 0, %s9, %s7
  $region1: #{tpu_custom_call.1} parent=0
    #allocation2 [shape = 'u8[8192]{0}', space=vmem, size = 0x2000, scoped, tag = 'input window, operand 0']
    #allocation3 [shape = 's32[2]{0}', space=sflag, size = 0x8, scoped, tag = 'scoped memory for tpu_custom_call.1']
    #allocation4 [shape = 's32[2]{0}', space=sflag, size = 0x8, scoped, tag = 'scoped memory for tpu_custom_call.1']
    #allocation5 [shape = 'u8[8192]{0}', space=vmem, size = 0x2000, scoped, tag = 'input window, operand 1']
    #allocation6 [shape = 's32[2]{0}', space=sflag, size = 0x8, scoped, tag = 'scoped memory for tpu_custom_call.1']
    #allocation7 [shape = 'u8[8192]{0}', space=vmem, size = 0x2000, scoped, tag = 'input window, operand 2, single buffered']
    #allocation8 [shape = 'u8[8192]{0}', space=vmem, size = 0x2000, scoped, tag = 'input window, operand 3, single buffered']
    #allocation9 [shape = 's32[1]{0}', space=sflag, size = 0x4, scoped, tag = 'scoped memory for tpu_custom_call.1']
    #allocation10 [shape = 'u8[8192]{0}', space=vmem, size = 0x2000, scoped, tag = 'input window, operand 5, single buffered']
    #allocation11 [shape = 'u8[8192]{0}', space=vmem, size = 0x2000, scoped, tag = 'output window, operand 0']
    %11 = vsyncpa [#allocation3], 0
    %s12 = scalar_lea.sflag [#allocation3], 1
    %13 = vsyncpa %s12, 0
    %14 = vsyncpa [#allocation6], 0
    %s15 = scalar_lea.sflag [#allocation6], 1
    %16 = vsyncpa %s15, 0
    %17 = vsyncpa [#allocation9], 0
    %18 = vsyncpa [#allocation4], 0
    %s19 = scalar_lea.sflag [#allocation4], 1
    %20 = vsyncpa %s19, 0
    loop: start=0, step=1, limit=4
    $region2: #{tpu_custom_call.1} parent=1 // loop_pre_header
      _
    $region3: #{tpu_custom_call.1} parent=1 // loop_header
      %s22 = sphi 0, %s26
      %p23 = scmp.ge.s32.totalorder %s22, 4
      %s32 = sphi 0, %s34
      %s35 = sphi 0, %s32
      %s36 = sphi 0, %s35
      %s52 = sphi 0, %s36
      %s58 = sphi 0, %s60
      %s61 = sphi 0, %s58
      %s62 = sphi 0, %s61
      %s78 = sphi 0, %s62
      %s82 = sphi 0, %s82
      %s84 = sphi 0, %s82
      %s85 = sphi 0, %s84
      %s99 = sphi 0, %s85
      %s103 = sphi 0, %s103
      %s105 = sphi 0, %s103
      %s106 = sphi 0, %s105
      %s120 = sphi 0, %s106
      %s124 = sphi 0, %s124
      %s126 = sphi 0, %s124
      %s127 = sphi 0, %s126
      %s141 = sphi 0, %s127
      %s145 = sphi 0, %s145
      %s147 = sphi 0, %s145
      %s148 = sphi 0, %s147
      %s162 = sphi 0, %s148
      %s168 = sphi 0, %s170
      %s171 = sphi 0, %s168
      %s172 = sphi 0, %s171
      %s188 = sphi 0, %s172
    $region4: #{tpu_custom_call.1} parent=1 // loop_header_branch
      %25 = sbr.rel (%p23) target = $region8
    $region5: #{tpu_custom_call.1} parent=1 // loop_body
      %s27 = ssub.s32 %s22, 1
      %s28 = ssub.s32 %s22, 2
      %s29 = sadd.s32 %s22, 1
      %s30 = ssub.s32 %s22, %s29
      %p31 = scmp.eq.s32.totalorder %s30, 0
      %s33 = sadd.s32 %s32, 1
      %s34 = scalar_select %p31, %s32, %s33
      %p37 = pneg %p31
      %p38 = scmp.eq.s32.totalorder %s22, 1
      %p39 = por %p37, %p38
      %p40 = scmp.ne.s32.totalorder %s32, %s35
      %p41 = scmp.eq.s32.totalorder %s22, 0
      %p42 = por %p40, %p41
      %p43 = scmp.ne.s32.totalorder %s32, %s35
      %p44 = scmp.eq.s32.totalorder %s27, 1
      %p45 = por %p43, %p44
      %p46 = scmp.ne.s32.totalorder %s35, %s36
      %p47 = scmp.eq.s32.totalorder %s27, 0
      %p48 = por %p46, %p47
      %p49 = scmp.ne.s32.totalorder %s35, %s36
      %p50 = scmp.eq.s32.totalorder %s28, 1
      %p51 = por %p49, %p50
      %p53 = scmp.ne.s32.totalorder %s36, %s52
      %p54 = scmp.eq.s32.totalorder %s28, 0
      %p55 = por %p53, %p54
      %s56 = ssub.s32 %s22, %s29
      %p57 = scmp.eq.s32.totalorder %s56, 0
      %s59 = sadd.s32 %s58, 1
      %s60 = scalar_select %p57, %s58, %s59
      %p63 = pneg %p57
      %p64 = scmp.eq.s32.totalorder %s22, 1
      %p65 = por %p63, %p64
      %p66 = scmp.ne.s32.totalorder %s58, %s61
      %p67 = scmp.eq.s32.totalorder %s22, 0
      %p68 = por %p66, %p67
      %p69 = scmp.ne.s32.totalorder %s58, %s61
      %p70 = scmp.eq.s32.totalorder %s27, 1
      %p71 = por %p69, %p70
      %p72 = scmp.ne.s32.totalorder %s61, %s62
      %p73 = scmp.eq.s32.totalorder %s27, 0
      %p74 = por %p72, %p73
      %p75 = scmp.ne.s32.totalorder %s61, %s62
      %p76 = scmp.eq.s32.totalorder %s28, 1
      %p77 = por %p75, %p76
      %p79 = scmp.ne.s32.totalorder %s62, %s78
      %p80 = scmp.eq.s32.totalorder %s28, 0
      %p81 = por %p79, %p80
      %s83 = sadd.s32 %s82, 1
      %p86 = scmp.eq.s32.totalorder %s22, 1
      %p87 = scmp.ne.s32.totalorder %s82, %s84
      %p88 = scmp.eq.s32.totalorder %s22, 0
      %p89 = por %p87, %p88
      %p90 = scmp.ne.s32.totalorder %s82, %s84
      %p91 = scmp.eq.s32.totalorder %s27, 1
      %p92 = por %p90, %p91
      %p93 = scmp.ne.s32.totalorder %s84, %s85
      %p94 = scmp.eq.s32.totalorder %s27, 0
      %p95 = por %p93, %p94
      %p96 = scmp.ne.s32.totalorder %s84, %s85
      %p97 = scmp.eq.s32.totalorder %s28, 1
      %p98 = por %p96, %p97
      %p100 = scmp.ne.s32.totalorder %s85, %s99
      %p101 = scmp.eq.s32.totalorder %s28, 0
      %p102 = por %p100, %p101
      %s104 = sadd.s32 %s103, 1
      %p107 = scmp.eq.s32.totalorder %s22, 1
      %p108 = scmp.ne.s32.totalorder %s103, %s105
      %p109 = scmp.eq.s32.totalorder %s22, 0
      %p110 = por %p108, %p109
      %p111 = scmp.ne.s32.totalorder %s103, %s105
      %p112 = scmp.eq.s32.totalorder %s27, 1
      %p113 = por %p111, %p112
      %p114 = scmp.ne.s32.totalorder %s105, %s106
      %p115 = scmp.eq.s32.totalorder %s27, 0
      %p116 = por %p114, %p115
      %p117 = scmp.ne.s32.totalorder %s105, %s106
      %p118 = scmp.eq.s32.totalorder %s28, 1
      %p119 = por %p117, %p118
      %p121 = scmp.ne.s32.totalorder %s106, %s120
      %p122 = scmp.eq.s32.totalorder %s28, 0
      %p123 = por %p121, %p122
      %s125 = sadd.s32 %s124, 1
      %p128 = scmp.eq.s32.totalorder %s22, 1
      %p129 = scmp.ne.s32.totalorder %s124, %s126
      %p130 = scmp.eq.s32.totalorder %s22, 0
      %p131 = por %p129, %p130
      %p132 = scmp.ne.s32.totalorder %s124, %s126
      %p133 = scmp.eq.s32.totalorder %s27, 1
      %p134 = por %p132, %p133
      %p135 = scmp.ne.s32.totalorder %s126, %s127
      %p136 = scmp.eq.s32.totalorder %s27, 0
      %p137 = por %p135, %p136
      %p138 = scmp.ne.s32.totalorder %s126, %s127
      %p139 = scmp.eq.s32.totalorder %s28, 1
      %p140 = por %p138, %p139
      %p142 = scmp.ne.s32.totalorder %s127, %s141
      %p143 = scmp.eq.s32.totalorder %s28, 0
      %p144 = por %p142, %p143
      %s146 = sadd.s32 %s145, 1
      %p149 = scmp.eq.s32.totalorder %s22, 1
      %p150 = scmp.ne.s32.totalorder %s145, %s147
      %p151 = scmp.eq.s32.totalorder %s22, 0
      %p152 = por %p150, %p151
      %p153 = scmp.ne.s32.totalorder %s145, %s147
      %p154 = scmp.eq.s32.totalorder %s27, 1
      %p155 = por %p153, %p154
      %p156 = scmp.ne.s32.totalorder %s147, %s148
      %p157 = scmp.eq.s32.totalorder %s27, 0
      %p158 = por %p156, %p157
      %p159 = scmp.ne.s32.totalorder %s147, %s148
      %p160 = scmp.eq.s32.totalorder %s28, 1
      %p161 = por %p159, %p160
      %p163 = scmp.ne.s32.totalorder %s148, %s162
      %p164 = scmp.eq.s32.totalorder %s28, 0
      %p165 = por %p163, %p164
      %s166 = ssub.s32 %s22, %s29
      %p167 = scmp.eq.s32.totalorder %s166, 0
      %s169 = sadd.s32 %s168, 1
      %s170 = scalar_select %p167, %s168, %s169
      %p173 = pneg %p167
      %p174 = scmp.eq.s32.totalorder %s22, 1
      %p175 = por %p173, %p174
      %p176 = scmp.ne.s32.totalorder %s168, %s171
      %p177 = scmp.eq.s32.totalorder %s22, 0
      %p178 = por %p176, %p177
      %p179 = scmp.ne.s32.totalorder %s168, %s171
      %p180 = scmp.eq.s32.totalorder %s27, 1
      %p181 = por %p179, %p180
      %p182 = scmp.ne.s32.totalorder %s171, %s172
      %p183 = scmp.eq.s32.totalorder %s27, 0
      %p184 = por %p182, %p183
      %p185 = scmp.ne.s32.totalorder %s171, %s172
      %p186 = scmp.eq.s32.totalorder %s28, 1
      %p187 = por %p185, %p186
      %p189 = scmp.ne.s32.totalorder %s172, %s188
      %p190 = scmp.eq.s32.totalorder %s28, 0
      %p191 = por %p189, %p190
      %p192 = scmp.le.s32.totalorder 1, %s22
      %p193 = scmp.lt.s32.totalorder %s22, 3
      %p194 = pnand %p192, %p193
      %p195 = pneg %p194
      // Predicated region
      $region9: #{tpu_custom_call.1} parent=5 // pred_check
        _
      $region10: #{tpu_custom_call.1} parent=5 // pred_check_branch
        %197 = sbr.rel (%p194) target = $region12
      $region11: #{tpu_custom_call.1} parent=5 // pred_region
        %s198 = ssub.s32 %s22, 1
        // Predicated region
        $region13: #{tpu_custom_call.1} parent=11 // pred_check
          %p199 = pneg %p95
        $region14: #{tpu_custom_call.1} parent=11 // pred_check_branch
          %201 = sbr.rel (%p199) target = $region16
        $region15: #{tpu_custom_call.1} parent=11 // pred_region
          %203 = vsyncadd [#allocation6], 0
          %s204 = sshll.u32 %s2, 4
          %s205 = int_to_ptr.hbm [resolvable:$true] %s204
          %s206 = sshll.u32 [#allocation7], 4
          %s207 = int_to_ptr.vmem [resolvable:$true] %s206
          %212 = dma.hbm_to_vmem [thread:$0]  %s205, 256, %s207, [#allocation6], 64, 64, 4
        $region16: #{tpu_custom_call.1} parent=11 // pred_fallthru
          _
        // Predicated region
        $region17: #{tpu_custom_call.1} parent=11 // pred_check
          %p213 = pneg %p116
        $region18: #{tpu_custom_call.1} parent=11 // pred_check_branch
          %215 = sbr.rel (%p213) target = $region20
        $region19: #{tpu_custom_call.1} parent=11 // pred_region
          %217 = vsyncadd [#allocation9], 0
          %s218 = sshll.u32 %s3, 4
          %s219 = int_to_ptr.hbm [resolvable:$true] %s218
          %s220 = sshll.u32 [#allocation8], 4
          %s221 = int_to_ptr.vmem [resolvable:$true] %s220
          %226 = dma.hbm_to_vmem [thread:$0]  %s219, 256, %s221, [#allocation9], 64, 64, 4
        $region20: #{tpu_custom_call.1} parent=11 // pred_fallthru
          _
        // Predicated region
        $region21: #{tpu_custom_call.1} parent=11 // pred_check
          %p227 = pneg %p137
        $region22: #{tpu_custom_call.1} parent=11 // pred_check_branch
          %229 = sbr.rel (%p227) target = $region24
        $region23: #{tpu_custom_call.1} parent=11 // pred_region
          _
        $region24: #{tpu_custom_call.1} parent=11 // pred_fallthru
          _
        // Predicated region
        $region25: #{tpu_custom_call.1} parent=11 // pred_check
          %p230 = pneg %p158
        $region26: #{tpu_custom_call.1} parent=11 // pred_check_branch
          %232 = sbr.rel (%p230) target = $region28
        $region27: #{tpu_custom_call.1} parent=11 // pred_region
          %234 = vsyncadd [#allocation9], 0
          %s235 = sshll.u32 %s5, 4
          %s236 = int_to_ptr.hbm [resolvable:$true] %s235
          %s237 = sshll.u32 [#allocation10], 4
          %s238 = int_to_ptr.vmem [resolvable:$true] %s237
          %243 = dma.hbm_to_vmem [thread:$0]  %s236, 256, %s238, [#allocation9], 64, 64, 4
        $region28: #{tpu_custom_call.1} parent=11 // pred_fallthru
          _
      $region12: #{tpu_custom_call.1} parent=5 // pred_fallthru
        _
      %p244 = scmp.lt.s32.totalorder %s22, 2
      // Predicated region
      $region29: #{tpu_custom_call.1} parent=5 // pred_check
        %p245 = pneg %p244
      $region30: #{tpu_custom_call.1} parent=5 // pred_check_branch
        %247 = sbr.rel (%p245) target = $region32
      $region31: #{tpu_custom_call.1} parent=5 // pred_region
        // Predicated region
        $region33: #{tpu_custom_call.1} parent=31 // pred_check
          %p248 = pneg %p42
        $region34: #{tpu_custom_call.1} parent=31 // pred_check_branch
          %250 = sbr.rel (%p248) target = $region36
        $region35: #{tpu_custom_call.1} parent=31 // pred_region
          %s251 = sand.u32 %s32, 1
          %s252 = scalar_lea.sflag [#allocation3], %s251
          %s253 = sand.u32 %s32, 1
          %s254 = smul.addr %s253, 8
          %s255 = scalar_lea.vmem [#allocation2], %s254
          %257 = vsyncadd %s252, 0
          %s258 = smul.addr %s22, 8
          %s259 = scalar_lea.hbm %s0, %s258
          %s261 = sshll.u32 %s259, 4
          %s262 = int_to_ptr.hbm [resolvable:$true] %s261
          %s263 = sshll.u32 %s255, 4
          %s264 = int_to_ptr.vmem [resolvable:$true] %s263
          %266 = dma.hbm_to_vmem [thread:$0]  %s262, 128, %s264, %s252
        $region36: #{tpu_custom_call.1} parent=31 // pred_fallthru
          _
        // Predicated region
        $region37: #{tpu_custom_call.1} parent=31 // pred_check
          %p267 = pneg %p68
        $region38: #{tpu_custom_call.1} parent=31 // pred_check_branch
          %269 = sbr.rel (%p267) target = $region40
        $region39: #{tpu_custom_call.1} parent=31 // pred_region
          %s270 = sand.u32 %s22, 1
          %s271 = scalar_lea.sflag [#allocation6], %s270
          %s272 = sand.u32 %s58, 1
          %s273 = smul.addr %s272, 8
          %s274 = scalar_lea.vmem [#allocation5], %s273
          %276 = vsyncadd %s271, 0
          %s277 = smul.addr %s22, 8
          %s278 = scalar_lea.hbm %s1, %s277
          %s280 = sshll.u32 %s278, 4
          %s281 = int_to_ptr.hbm [resolvable:$true] %s280
          %s282 = sshll.u32 %s274, 4
          %s283 = int_to_ptr.vmem [resolvable:$true] %s282
          %285 = dma.hbm_to_vmem [thread:$0]  %s281, 128, %s283, %s271
        $region40: #{tpu_custom_call.1} parent=31 // pred_fallthru
          _
      $region32: #{tpu_custom_call.1} parent=5 // pred_fallthru
        _
      %p286 = scmp.le.s32.totalorder 1, %s22
      %p287 = scmp.lt.s32.totalorder %s22, 3
      %p288 = pnand %p286, %p287
      %p289 = pneg %p288
      // Predicated region
      $region41: #{tpu_custom_call.1} parent=5 // pred_check
        _
      $region42: #{tpu_custom_call.1} parent=5 // pred_check_branch
        %291 = sbr.rel (%p288) target = $region44
      $region43: #{tpu_custom_call.1} parent=5 // pred_region
        %s292 = ssub.s32 %s22, 1
        %s293 = sand.u32 %s35, 1
        %s294 = scalar_lea.sflag [#allocation3], %s293
        %s295 = sand.u32 %s35, 1
        %s296 = smul.addr %s295, 8
        %s297 = scalar_lea.vmem [#allocation2], %s296
        // Predicated region
        $region45: #{tpu_custom_call.1} parent=43 // pred_check
          %p298 = pneg %p48
        $region46: #{tpu_custom_call.1} parent=43 // pred_check_branch
          %300 = sbr.rel (%p298) target = $region48
        $region47: #{tpu_custom_call.1} parent=43 // pred_region
          %302 = dma.done %s294, 128
        $region48: #{tpu_custom_call.1} parent=43 // pred_fallthru
          _
        %s303 = sand.u32 %s27, 1
        %s304 = scalar_lea.sflag [#allocation6], %s303
        %s305 = sand.u32 %s61, 1
        %s306 = smul.addr %s305, 8
        %s307 = scalar_lea.vmem [#allocation5], %s306
        // Predicated region
        $region49: #{tpu_custom_call.1} parent=43 // pred_check
          %p308 = pneg %p74
        $region50: #{tpu_custom_call.1} parent=43 // pred_check_branch
          %310 = sbr.rel (%p308) target = $region52
        $region51: #{tpu_custom_call.1} parent=43 // pred_region
          %312 = dma.done %s304, 128
        $region52: #{tpu_custom_call.1} parent=43 // pred_fallthru
          _
        // Predicated region
        $region53: #{tpu_custom_call.1} parent=43 // pred_check
          %p313 = pneg %p95
        $region54: #{tpu_custom_call.1} parent=43 // pred_check_branch
          %315 = sbr.rel (%p313) target = $region56
        $region55: #{tpu_custom_call.1} parent=43 // pred_region
          %317 = dma.done [#allocation6], 256
        $region56: #{tpu_custom_call.1} parent=43 // pred_fallthru
          _
        // Predicated region
        $region57: #{tpu_custom_call.1} parent=43 // pred_check
          %p318 = pneg %p116
        $region58: #{tpu_custom_call.1} parent=43 // pred_check_branch
          %320 = sbr.rel (%p318) target = $region60
        $region59: #{tpu_custom_call.1} parent=43 // pred_region
          %322 = dma.done [#allocation9], 256
        $region60: #{tpu_custom_call.1} parent=43 // pred_fallthru
          _
        // Predicated region
        $region61: #{tpu_custom_call.1} parent=43 // pred_check
          %p323 = pneg %p158
        $region62: #{tpu_custom_call.1} parent=43 // pred_check_branch
          %325 = sbr.rel (%p323) target = $region64
        $region63: #{tpu_custom_call.1} parent=43 // pred_region
          %327 = dma.done [#allocation9], 256
        $region64: #{tpu_custom_call.1} parent=43 // pred_fallthru
          _
        %s328 = sand.u32 %s35, 1
        %s329 = scalar_lea.sflag [#allocation3], %s328
        %s330 = sand.u32 %s35, 1
        %s331 = smul.addr %s330, 8
        %s332 = scalar_lea.vmem [#allocation2], %s331
        %p333 = pneg %p48
        %p334 = pneg %p45
        %s335 = sand.u32 %s27, 1
        %s336 = scalar_lea.sflag [#allocation6], %s335
        %s337 = sand.u32 %s61, 1
        %s338 = smul.addr %s337, 8
        %s339 = scalar_lea.vmem [#allocation5], %s338
        %p340 = pneg %p74
        %p341 = pneg %p71
        %p342 = pneg %p95
        %p343 = pneg %p92
        %p344 = pneg %p116
        %p345 = pneg %p113
        %p346 = pneg %p137
        %p347 = pneg %p134
        %p348 = pneg %p158
        %p349 = pneg %p155
        %p350 = pneg %p184
        %p351 = pneg %p181
        %s352 = sand.u32 %s171, 1
        %s353 = scalar_lea.sflag [#allocation4], %s352
        %s354 = sand.u32 %s171, 1
        %s355 = smul.addr %s354, 8
        %s356 = scalar_lea.vmem [#allocation11], %s355
        %v358 = vld [vmem:[%s307] sm:$0xff]
        %v359 = vpack.c.bf16 %v358, %v358
        %v360 = vld [vmem:[%s297] sm:$0xff]
        %v361 = vpack.c.bf16 %v360, %v360
        %v362 = vld [vmem:[#allocation7] sm:$0xf]
        %v363 = vld [vmem:[#allocation7 + $0x4] sm:$0xf]
        %v364 = vld [vmem:[#allocation7 + $0x8] sm:$0xf]
        %v365 = vld [vmem:[#allocation7 + $0xc] sm:$0xf]
        %v370 = vunpack.c.l.b16 %v362
        %v371 = vunpack.c.l.b16 %v363
        %v372 = vunpack.c.l.b16 %v364
        %v373 = vunpack.c.l.b16 %v365
        %v374 = vpack.c.b16 %v371, %v370
        %v375 = vpack.c.b16 %v373, %v372
        %vm378 = vcmask 261120
        %v380 = vsel %vm378, %v359, 0
        %382 = vmatpush.bf16.msra.mxu0 0
        %383 = vmatpush.bf16.msra.mxu0 0
        %384 = vmatpush.bf16.msra.mxu0 0
        %385 = vmatpush.bf16.msra.mxu0 0
        %386 = vmatpush.bf16.msra.mxu0 0
        %387 = vmatpush.bf16.msra.mxu0 0
        %388 = vmatpush.bf16.msra.mxu0 %v375
        %389 = vmatpush.bf16.msra.mxu0 %v374
        %390 = vmatmul.bf16.gmra.mxu0 %v380
        %v391 = vpop.f32.mrf.mxu0
        %v392 = vadd.f32 0.0, %v391
        %v393 = vpop.f32.mrf.mxu0
        %394 = vdwg.mxu0
        %v395 = vld [vmem:[#allocation8] sm:$0xf]
        %v396 = vld [vmem:[#allocation8 + $0x4] sm:$0xf]
        %v397 = vld [vmem:[#allocation8 + $0x8] sm:$0xf]
        %v398 = vld [vmem:[#allocation8 + $0xc] sm:$0xf]
        %v403 = vunpack.c.l.b16 %v395
        %v404 = vunpack.c.l.b16 %v396
        %v405 = vunpack.c.l.b16 %v397
        %v406 = vunpack.c.l.b16 %v398
        %v407 = vpack.c.b16 %v404, %v403
        %v408 = vpack.c.b16 %v406, %v405
        %v412 = vsel %vm378, %v361, 0
        %414 = vmatpush.bf16.msra.mxu0 0
        %415 = vmatpush.bf16.msra.mxu0 0
        %416 = vmatpush.bf16.msra.mxu0 0
        %417 = vmatpush.bf16.msra.mxu0 0
        %418 = vmatpush.bf16.msra.mxu0 0
        %419 = vmatpush.bf16.msra.mxu0 0
        %420 = vmatpush.bf16.msra.mxu0 %v408
        %421 = vmatpush.bf16.msra.mxu0 %v407
        %422 = vmatmul.bf16.gmra.mxu0 %v412
        %v423 = vpop.f32.mrf.mxu0
        %v424 = vadd.f32 0.0, %v423
        %v425 = vpop.f32.mrf.mxu0
        %426 = vdwg.mxu0
        %v427 = vadd.f32 %v392, %v424
        %v428 = vmul.f32 %v427, 0.5
        %v429 = vtanh.pop %v428
        %v430 = vadd.f32 %v429, 1.0
        %v431 = vmul.f32 %v430, 0.5
        %v432 = vmul.f32 %v431, %v360
        %v433 = vpack.c.bf16 %v432, %v432
        %v434 = vld [vmem:[#allocation10] sm:$0xf]
        %v435 = vld [vmem:[#allocation10 + $0x4] sm:$0xf]
        %v436 = vld [vmem:[#allocation10 + $0x8] sm:$0xf]
        %v437 = vld [vmem:[#allocation10 + $0xc] sm:$0xf]
        %v442 = vunpack.c.l.b16 %v434
        %v443 = vunpack.c.l.b16 %v435
        %v444 = vunpack.c.l.b16 %v436
        %v445 = vunpack.c.l.b16 %v437
        %v446 = vpack.c.b16 %v443, %v442
        %v447 = vpack.c.b16 %v445, %v444
        %v451 = vsel %vm378, %v433, 0
        %453 = vmatpush.bf16.msra.mxu0 0
        %454 = vmatpush.bf16.msra.mxu0 0
        %455 = vmatpush.bf16.msra.mxu0 0
        %456 = vmatpush.bf16.msra.mxu0 0
        %457 = vmatpush.bf16.msra.mxu0 0
        %458 = vmatpush.bf16.msra.mxu0 0
        %459 = vmatpush.bf16.msra.mxu0 %v447
        %460 = vmatpush.bf16.msra.mxu0 %v446
        %461 = vmatmul.bf16.gmra.mxu0 %v451
        %v462 = vpop.f32.mrf.mxu0
        %v463 = vadd.f32 0.0, %v462
        %v464 = vpop.f32.mrf.mxu0
        %465 = vdwg.mxu0
        %467 = vrot.lane.b32.xlu0 %v463, 64
        %v468 = vpop.permute.xlu0 %467
        %v470 = vadd.f32 %v392, %v468
        %v471 = vld [vmem:[%s4] sm:$0x1]
        %v473 = vperm.slane %v471, 0
        %474 = vrot.lane.b32.xlu0 %v473, 32
        %v475 = vpop.permute.xlu0 %474
        %v477 = vadd.f32 %v427, %v475
        %v478 = vmul.f32 %v477, 0.5
        %v479 = vtanh.pop %v478
        %v480 = vadd.f32 %v479, 1.0
        %v481 = vmul.f32 %v480, 0.5
        %v482 = vtanh.pop %v470
        %484 = vrot.lane.b32.xlu0 %v360, 64
        %v485 = vpop.permute.xlu0 %484
        %v487 = vsub.f32 %v482, %v485
        %489 = vrot.lane.b32.xlu0 %v487, 96
        %v490 = vpop.permute.xlu0 %489
        %v492 = vmul.f32 %v481, %v490
        %494 = vrot.lane.b32.xlu0 %v492, 96
        %v495 = vpop.permute.xlu0 %494
        %v497 = vadd.f32 %v360, %v495
        %498 = vst.msk [vmem:[%s356] sm:$0xff] %vm378, %v497
        %s499 = sand.u32 %s171, 1
        %s500 = scalar_lea.sflag [#allocation4], %s499
        %s501 = sand.u32 %s171, 1
        %s502 = smul.addr %s501, 8
        %s503 = scalar_lea.vmem [#allocation11], %s502
        // Predicated region
        $region65: #{tpu_custom_call.1} parent=43 // pred_check
          %p504 = pneg %p181
        $region66: #{tpu_custom_call.1} parent=43 // pred_check_branch
          %506 = sbr.rel (%p504) target = $region68
        $region67: #{tpu_custom_call.1} parent=43 // pred_region
          %508 = vsyncadd %s500, 0
          %s509 = smul.addr %s27, 8
          %s510 = scalar_lea.hbm %s6, %s509
          %s512 = sshll.u32 %s503, 4
          %s513 = int_to_ptr.vmem [resolvable:$true] %s512
          %s514 = sshll.u32 %s510, 4
          %s515 = int_to_ptr.hbm [resolvable:$true] %s514
          %517 = dma.vmem_to_hbm [thread:$0]  %s513, 128, %s515, %s500
        $region68: #{tpu_custom_call.1} parent=43 // pred_fallthru
          _
      $region44: #{tpu_custom_call.1} parent=5 // pred_fallthru
        _
      %p518 = scmp.le.s32.totalorder 2, %s22
      // Predicated region
      $region69: #{tpu_custom_call.1} parent=5 // pred_check
        %p519 = pneg %p518
      $region70: #{tpu_custom_call.1} parent=5 // pred_check_branch
        %521 = sbr.rel (%p519) target = $region72
      $region71: #{tpu_custom_call.1} parent=5 // pred_region
        %s522 = ssub.s32 %s22, 2
        // Predicated region
        $region73: #{tpu_custom_call.1} parent=71 // pred_check
          %p523 = pneg %p187
        $region74: #{tpu_custom_call.1} parent=71 // pred_check_branch
          %525 = sbr.rel (%p523) target = $region76
        $region75: #{tpu_custom_call.1} parent=71 // pred_region
          %s526 = sand.u32 %s172, 1
          %s527 = scalar_lea.sflag [#allocation4], %s526
          %s528 = sand.u32 %s172, 1
          %s529 = smul.addr %s528, 8
          %s530 = scalar_lea.vmem [#allocation11], %s529
          %532 = dma.done %s527, 128
        $region76: #{tpu_custom_call.1} parent=71 // pred_fallthru
          _
      $region72: #{tpu_custom_call.1} parent=5 // pred_fallthru
        _
    $region6: #{tpu_custom_call.1} parent=1 // loop_footer
      %s26 = sadd.s32 1, %s22
    $region7: #{tpu_custom_call.1} parent=1 // loop_footer_branch
      %21 = sbr.rel target = $region3
    $region8: #{tpu_custom_call.1} parent=1 // loop_exit
      _
    %533 = vsyncpa [#allocation3], 1
    %s534 = scalar_lea.sflag [#allocation3], 1
    %535 = vsyncpa %s534, 1
    %536 = vsyncpa [#allocation6], 1
    %s537 = scalar_lea.sflag [#allocation6], 1
    %538 = vsyncpa %s537, 1
    %539 = vsyncpa [#allocation9], 1
    %540 = vsyncpa [#allocation4], 1
    %s541 = scalar_lea.sflag [#allocation4], 1
    %542 = vsyncpa %s541, 1

</llo_original>
